<compile_context>
chip_gen: v7x
topology: tpu7x:2x2x1
jax: 0.10.0
libtpu: 0.0.40
codegen_flags: <defaults>
</compile_context>

<pallas_src>
import jax
import jax.numpy as jnp
from jax.experimental import pallas as pl
from jax.experimental.pallas import tpu as pltpu

IN_FEATURES = 128
H1, H2, H3 = 256, 128, 64
NUM_OUTPUTS = 18
OUT_PAD = 128              # lane-dense padded output width (multiple of 128)

# Packed (384, 256) weight layout (see header comment).
PACK_ROWS = 384
PACK_COLS = 256
W1_ROW, W1_COL = 0, 0        # (128, 256)
W2_ROW, W2_COL = 128, 0      # (256, 128)
W4_ROW, W4_COL = 128, 128    # ( 64, 128)  cols 18:128 zero
W3_ROW, W3_COL = 192, 128    # (128,  64)


def _clamp_mask(h, cdt):
    """Global max over the whole (batch, features) activation of ONE forward; returns the
    0/1 spike mask (exact in bf16) and the f32 peak value 0.01*m."""
    m = jnp.max(h)
    mask = jnp.where(h > m * 0.65, 1.0, 0.0).astype(cdt)
    return mask, m * 0.01


def net_kernel(x_ref, w_ref, b_ref, o_ref):
    cdt = w_ref.dtype                                            # bf16 MXU input dtype

    x = x_ref[0].astype(cdt)                                     # (B, 128)

    # Layer 1: 128 -> 256
    w1 = w_ref[W1_ROW:W1_ROW + IN_FEATURES, :]                   # (128, 256) bf16
    b1 = b_ref[0:1, :]                                           # (1, 256)   f32
    h = jnp.dot(x, w1, preferred_element_type=jnp.float32) + b1
    mask, peak = _clamp_mask(h, cdt)

    # Layer 2: 256 -> 128   (spike factoring: peak * (mask @ W) + b, all-f32 epilogue)
    w2 = w_ref[W2_ROW:W2_ROW + H1, W2_COL:W2_COL + H2]           # (256, 128)
    b2 = b_ref[1:2, 0:H2]
    h = peak * jnp.dot(mask, w2, preferred_element_type=jnp.float32) + b2
    mask, peak = _clamp_mask(h, cdt)

    # Layer 3: 128 -> 64    (only the 64 real lanes; padding must NOT enter the next max)
    w3 = w_ref[W3_ROW:W3_ROW + H2, W3_COL:W3_COL + H3]           # (128, 64)
    b3 = b_ref[2:3, 0:H3]
    h = peak * jnp.dot(mask, w3, preferred_element_type=jnp.float32) + b3
    mask, peak = _clamp_mask(h, cdt)

    # Layer 4: 64 -> 18, computed lane-dense at width 128 (w4/b4 cols 18:128 are zero)
    w4 = w_ref[W4_ROW:W4_ROW + H3, W4_COL:W4_COL + OUT_PAD]      # (64, 128)
    b4 = b_ref[3:4, 0:OUT_PAD]
    out = peak * jnp.dot(mask, w4, preferred_element_type=jnp.float32) + b4
    o_ref[0] = out.astype(o_ref.dtype)


def net_forward_steps(xs, w_packed, b_packed):
    """T independent forwards in one pallas_call. xs: (T, B, 128) -> (T, B, 18).
    Packed params stay VMEM-resident across the step grid (single DMA per call)."""
    t_steps, batch, _ = xs.shape

    flops = 2 * t_steps * batch * (IN_FEATURES * H1 + H1 * H2 + H2 * H3 + H3 * OUT_PAD)
    bytes_accessed = (PACK_ROWS * PACK_COLS * 2          # bf16 weights
                      + 4 * PACK_COLS * 4                # f32 biases
                      + xs.size * 4                      # f32 activations in
                      + t_steps * batch * OUT_PAD * 4)   # f32 padded output

    out_padded = pl.pallas_call(
        net_kernel,
        grid=(t_steps,),
        in_specs=[
            pl.BlockSpec((1, batch, IN_FEATURES), lambda t: (t, 0, 0)),
            pl.BlockSpec((PACK_ROWS, PACK_COLS), lambda t: (0, 0)),   # weight-resident
            pl.BlockSpec((4, PACK_COLS), lambda t: (0, 0)),           # bias-resident
        ],
        out_specs=pl.BlockSpec((1, batch, OUT_PAD), lambda t: (t, 0, 0)),
        out_shape=jax.ShapeDtypeStruct((t_steps, batch, OUT_PAD), jnp.float32),
        compiler_params=pltpu.CompilerParams(
            dimension_semantics=("parallel",),            # steps are independent forwards
            vmem_limit_bytes=4 << 20),
        cost_estimate=pl.CostEstimate(flops=flops, transcendentals=0,
                                      bytes_accessed=bytes_accessed),
    )(xs, w_packed, b_packed)
    return out_padded[:, :, :NUM_OUTPUTS]


def net_forward(x, w_packed, b_packed):
    """Single forward (module semantics: one clamp-max per forward over the whole batch)."""
    return net_forward_steps(x[None], w_packed, b_packed)[0]


def init_params(key):
    """nn.Linear-style init (uniform +/- 1/sqrt(fan_in)); weights pre-transposed to (in, out)."""
    def linear(k, fan_in, fan_out):
        kw, kb = jax.random.split(k)
        bound = 1.0 / jnp.sqrt(jnp.float32(fan_in))
        w = jax.random.uniform(kw, (fan_in, fan_out), jnp.float32, -bound, bound)
        b = jax.random.uniform(kb, (fan_out,), jnp.float32, -bound, bound)
        return w, b

    k1, k2, k3, k4 = jax.random.split(key, 4)
    return (
        linear(k1, IN_FEATURES, H1),
        linear(k2, H1, H2),
        linear(k3, H2, H3),
        linear(k4, H3, NUM_OUTPUTS),
    )


def pack_params(params, weight_dtype=jnp.bfloat16):
    """Pack the 4 (pre-transposed, zero-padded) weights into one (384, 256) bf16 buffer
    and the 4 biases into one (4, 256) f32 buffer."""
    (w1, b1), (w2, b2), (w3, b3), (w4, b4) = params

    w_buf = jnp.zeros((PACK_ROWS, PACK_COLS), jnp.float32)
    w_buf = w_buf.at[W1_ROW:W1_ROW + IN_FEATURES, W1_COL:W1_COL + H1].set(w1)
    w_buf = w_buf.at[W2_ROW:W2_ROW + H1, W2_COL:W2_COL + H2].set(w2)
    w_buf = w_buf.at[W3_ROW:W3_ROW + H2, W3_COL:W3_COL + H3].set(w3)
    w_buf = w_buf.at[W4_ROW:W4_ROW + H3, W4_COL:W4_COL + NUM_OUTPUTS].set(w4)

    b_buf = jnp.zeros((4, PACK_COLS), jnp.float32)
    b_buf = b_buf.at[0, :H1].set(b1)
    b_buf = b_buf.at[1, :H2].set(b2)
    b_buf = b_buf.at[2, :H3].set(b3)
    b_buf = b_buf.at[3, :NUM_OUTPUTS].set(b4)

    return w_buf.astype(weight_dtype), b_buf


def reference_forward(xs, w_packed, b_packed):
    """Pure-JAX reference mirroring the kernel math exactly (bf16 weights, exact 0/1 bf16
    spike mask, f32 accumulate / bias / peak), vmapped over the step axis."""
    cdt = w_packed.dtype
    w1 = w_packed[W1_ROW:W1_ROW + IN_FEATURES, :]
    w2 = w_packed[W2_ROW:W2_ROW + H1, W2_COL:W2_COL + H2]
    w3 = w_packed[W3_ROW:W3_ROW + H2, W3_COL:W3_COL + H3]
    w4 = w_packed[W4_ROW:W4_ROW + H3, W4_COL:W4_COL + OUT_PAD]
    b1 = b_packed[0:1, :]
    b2 = b_packed[1:2, :H2]
    b3 = b_packed[2:3, :H3]
    b4 = b_packed[3:4, :OUT_PAD]

    def clamp_mask(h):
        m = jnp.max(h)
        return jnp.where(h > m * 0.65, 1.0, 0.0).astype(cdt), m * 0.01

    def one(x):
        h = jnp.dot(x.astype(cdt), w1, preferred_element_type=jnp.float32) + b1
        mask, peak = clamp_mask(h)
        h = peak * jnp.dot(mask, w2, preferred_element_type=jnp.float32) + b2
        mask, peak = clamp_mask(h)
        h = peak * jnp.dot(mask, w3, preferred_element_type=jnp.float32) + b3
        mask, peak = clamp_mask(h)
        out = peak * jnp.dot(mask, w4, preferred_element_type=jnp.float32) + b4
        return out[:, :NUM_OUTPUTS]

    return jax.vmap(one)(xs)


if __name__ == "__main__":
    key = jax.random.PRNGKey(0)
    kx, kxs, kp = jax.random.split(key, 3)

    batch = 2
    w_packed, b_packed = pack_params(init_params(kp))

    # 1) Single forward (exact module semantics: one global clamp-max per forward).
    x = jax.random.normal(kx, (batch, IN_FEATURES), jnp.float32)
    out = jax.block_until_ready(net_forward(x, w_packed, b_packed))
    assert out.shape == (batch, NUM_OUTPUTS)
    ref = reference_forward(x[None], w_packed, b_packed)[0]
    assert jnp.allclose(out, ref, atol=1e-3, rtol=1e-3), "mismatch vs pure-JAX reference"

    # 2) Amortized path: T independent forwards per pallas_call (weights DMA'd once).
    T = 4
    xs = jax.random.normal(kxs, (T, batch, IN_FEATURES), jnp.float32)
    outs = jax.block_until_ready(net_forward_steps(xs, w_packed, b_packed))
    assert outs.shape == (T, batch, NUM_OUTPUTS)
    refs = reference_forward(xs, w_packed, b_packed)
    assert jnp.allclose(outs, refs, atol=1e-3, rtol=1e-3), "mismatch on multi-step path"

    print("KERNEL_OK")
</pallas_src>

<mosaic_0001>
module attributes {stable_mosaic.version = 11 : i64} {
  func.func @net_kernel(%arg0: i32, %arg1: memref<1x2x128xf32, #tpu.memory_space<vmem>>, %arg2: memref<384x256xbf16, #tpu.memory_space<vmem>>, %arg3: memref<4x256xf32, #tpu.memory_space<vmem>>, %arg4: memref<1x2x128xf32, #tpu.memory_space<vmem>>) attributes {dimension_semantics = [#tpu.dimension_semantics<parallel>], iteration_bounds = array<i64: 1>, scalar_prefetch = 0 : i64, scratch_operands = 0 : i64, tpu.core_type = #tpu.core_type<tc>, window_params = [{transform_indices = @transform_0, window_bounds = array<i64: 1, 2, 128>}, {pipeline_mode = #tpu.pipeline_mode<synchronous>, transform_indices = @transform_1, window_bounds = array<i64: 384, 256>}, {pipeline_mode = #tpu.pipeline_mode<synchronous>, transform_indices = @transform_2, window_bounds = array<i64: 4, 256>}, {transform_indices = @transform_3, window_bounds = array<i64: 1, 2, 128>}]} {
    %c0 = arith.constant 0 : index
    %c0_0 = arith.constant 0 : index
    %c0_1 = arith.constant 0 : index
    %0 = vector.load %arg1[%c0, %c0_0, %c0_1] : memref<1x2x128xf32, #tpu.memory_space<vmem>>, vector<1x2x128xf32>
    %1 = vector.shape_cast %0 : vector<1x2x128xf32> to vector<2x128xf32>
    %2 = arith.truncf %1 : vector<2x128xf32> to vector<2x128xbf16>
    %c0_2 = arith.constant 0 : index
    %c0_3 = arith.constant 0 : index
    %3 = vector.load %arg2[%c0_2, %c0_3] : memref<384x256xbf16, #tpu.memory_space<vmem>>, vector<128x256xbf16>
    %c0_4 = arith.constant 0 : index
    %c0_5 = arith.constant 0 : index
    %4 = vector.load %arg3[%c0_4, %c0_5] : memref<4x256xf32, #tpu.memory_space<vmem>>, vector<1x256xf32>
    %cst = arith.constant dense<0.000000e+00> : vector<2x256xf32>
    %5 = tpu.matmul %2, %3, %cst {dimension_numbers = #tpu.dot_dimension_numbers<[1], [0], [0], [1], [0, 0, 1, 1], [], []>} : vector<2x128xbf16>, vector<128x256xbf16>, vector<2x256xf32> -> vector<2x256xf32>
    %6 = vector.broadcast %4 : vector<1x256xf32> to vector<2x256xf32>
    %7 = arith.addf %5, %6 : vector<2x256xf32>
    %8 = vector.shape_cast %7 : vector<2x256xf32> to vector<1x2x256xf32>
    %cst_6 = arith.constant dense<0xFF800000> : vector<1xf32>
    %9 = vector.multi_reduction <maximumf>, %8, %cst_6 [1, 2] : vector<1x2x256xf32> to vector<1xf32>
    %10 = vector.shape_cast %9 : vector<1xf32> to vector<1x1x1xf32>
    %11 = vector.extract %10[0, 0, 0] : f32 from vector<1x1x1xf32>
    %cst_7 = arith.constant 6.500000e-01 : f32
    %12 = arith.mulf %11, %cst_7 : f32
    %13 = vector.broadcast %12 : f32 to vector<2x256xf32>
    %14 = arith.cmpf ogt, %7, %13 : vector<2x256xf32>
    %cst_8 = arith.constant 1.000000e+00 : f32
    %cst_9 = arith.constant 0.000000e+00 : f32
    %15 = vector.broadcast %cst_8 : f32 to vector<2x256xf32>
    %16 = vector.broadcast %cst_9 : f32 to vector<2x256xf32>
    %17 = arith.select %14, %15, %16 : vector<2x256xi1>, vector<2x256xf32>
    %18 = arith.truncf %17 : vector<2x256xf32> to vector<2x256xbf16>
    %cst_10 = arith.constant 0.00999999977 : f32
    %19 = arith.mulf %11, %cst_10 : f32
    %c128 = arith.constant 128 : index
    %c0_11 = arith.constant 0 : index
    %20 = vector.load %arg2[%c128, %c0_11] : memref<384x256xbf16, #tpu.memory_space<vmem>>, vector<256x128xbf16>
    %c1 = arith.constant 1 : index
    %c0_12 = arith.constant 0 : index
    %21 = vector.load %arg3[%c1, %c0_12] : memref<4x256xf32, #tpu.memory_space<vmem>>, vector<1x128xf32>
    %cst_13 = arith.constant dense<0.000000e+00> : vector<2x128xf32>
    %22 = tpu.matmul %18, %20, %cst_13 {dimension_numbers = #tpu.dot_dimension_numbers<[1], [0], [0], [1], [0, 0, 1, 1], [], []>} : vector<2x256xbf16>, vector<256x128xbf16>, vector<2x128xf32> -> vector<2x128xf32>
    %23 = vector.broadcast %19 : f32 to vector<2x128xf32>
    %24 = arith.mulf %23, %22 : vector<2x128xf32>
    %25 = vector.broadcast %21 : vector<1x128xf32> to vector<2x128xf32>
    %26 = arith.addf %24, %25 : vector<2x128xf32>
    %27 = vector.shape_cast %26 : vector<2x128xf32> to vector<1x2x128xf32>
    %cst_14 = arith.constant dense<0xFF800000> : vector<1xf32>
    %28 = vector.multi_reduction <maximumf>, %27, %cst_14 [1, 2] : vector<1x2x128xf32> to vector<1xf32>
    %29 = vector.shape_cast %28 : vector<1xf32> to vector<1x1x1xf32>
    %30 = vector.extract %29[0, 0, 0] : f32 from vector<1x1x1xf32>
    %cst_15 = arith.constant 6.500000e-01 : f32
    %31 = arith.mulf %30, %cst_15 : f32
    %32 = vector.broadcast %31 : f32 to vector<2x128xf32>
    %33 = arith.cmpf ogt, %26, %32 : vector<2x128xf32>
    %cst_16 = arith.constant 1.000000e+00 : f32
    %cst_17 = arith.constant 0.000000e+00 : f32
    %34 = vector.broadcast %cst_16 : f32 to vector<2x128xf32>
    %35 = vector.broadcast %cst_17 : f32 to vector<2x128xf32>
    %36 = arith.select %33, %34, %35 : vector<2x128xi1>, vector<2x128xf32>
    %37 = arith.truncf %36 : vector<2x128xf32> to vector<2x128xbf16>
    %cst_18 = arith.constant 0.00999999977 : f32
    %38 = arith.mulf %30, %cst_18 : f32
    %c192 = arith.constant 192 : index
    %c128_19 = arith.constant 128 : index
    %39 = vector.load %arg2[%c192, %c128_19] : memref<384x256xbf16, #tpu.memory_space<vmem>>, vector<128x64xbf16>
    %c2 = arith.constant 2 : index
    %c0_20 = arith.constant 0 : index
    %40 = vector.load %arg3[%c2, %c0_20] : memref<4x256xf32, #tpu.memory_space<vmem>>, vector<1x64xf32>
    %cst_21 = arith.constant dense<0.000000e+00> : vector<2x64xf32>
    %41 = tpu.matmul %37, %39, %cst_21 {dimension_numbers = #tpu.dot_dimension_numbers<[1], [0], [0], [1], [0, 0, 1, 1], [], []>} : vector<2x128xbf16>, vector<128x64xbf16>, vector<2x64xf32> -> vector<2x64xf32>
    %42 = vector.broadcast %38 : f32 to vector<2x64xf32>
    %43 = arith.mulf %42, %41 : vector<2x64xf32>
    %44 = vector.broadcast %40 : vector<1x64xf32> to vector<2x64xf32>
    %45 = arith.addf %43, %44 : vector<2x64xf32>
    %46 = vector.shape_cast %45 : vector<2x64xf32> to vector<1x2x64xf32>
    %cst_22 = arith.constant dense<0xFF800000> : vector<1xf32>
    %47 = vector.multi_reduction <maximumf>, %46, %cst_22 [1, 2] : vector<1x2x64xf32> to vector<1xf32>
    %48 = vector.shape_cast %47 : vector<1xf32> to vector<1x1x1xf32>
    %49 = vector.extract %48[0, 0, 0] : f32 from vector<1x1x1xf32>
    %cst_23 = arith.constant 6.500000e-01 : f32
    %50 = arith.mulf %49, %cst_23 : f32
    %51 = vector.broadcast %50 : f32 to vector<2x64xf32>
    %52 = arith.cmpf ogt, %45, %51 : vector<2x64xf32>
    %cst_24 = arith.constant 1.000000e+00 : f32
    %cst_25 = arith.constant 0.000000e+00 : f32
    %53 = vector.broadcast %cst_24 : f32 to vector<2x64xf32>
    %54 = vector.broadcast %cst_25 : f32 to vector<2x64xf32>
    %55 = arith.select %52, %53, %54 : vector<2x64xi1>, vector<2x64xf32>
    %56 = arith.truncf %55 : vector<2x64xf32> to vector<2x64xbf16>
    %cst_26 = arith.constant 0.00999999977 : f32
    %57 = arith.mulf %49, %cst_26 : f32
    %c128_27 = arith.constant 128 : index
    %c128_28 = arith.constant 128 : index
    %58 = vector.load %arg2[%c128_27, %c128_28] : memref<384x256xbf16, #tpu.memory_space<vmem>>, vector<64x128xbf16>
    %c3 = arith.constant 3 : index
    %c0_29 = arith.constant 0 : index
    %59 = vector.load %arg3[%c3, %c0_29] : memref<4x256xf32, #tpu.memory_space<vmem>>, vector<1x128xf32>
    %cst_30 = arith.constant dense<0.000000e+00> : vector<2x128xf32>
    %60 = tpu.matmul %56, %58, %cst_30 {dimension_numbers = #tpu.dot_dimension_numbers<[1], [0], [0], [1], [0, 0, 1, 1], [], []>} : vector<2x64xbf16>, vector<64x128xbf16>, vector<2x128xf32> -> vector<2x128xf32>
    %61 = vector.broadcast %57 : f32 to vector<2x128xf32>
    %62 = arith.mulf %61, %60 : vector<2x128xf32>
    %63 = vector.broadcast %59 : vector<1x128xf32> to vector<2x128xf32>
    %64 = arith.addf %62, %63 : vector<2x128xf32>
    %c0_31 = arith.constant 0 : index
    %c0_32 = arith.constant 0 : index
    %c0_33 = arith.constant 0 : index
    %65 = vector.load %arg4[%c0_31, %c0_32, %c0_33] : memref<1x2x128xf32, #tpu.memory_space<vmem>>, vector<1x2x128xf32>
    %66 = vector.shape_cast %65 : vector<1x2x128xf32> to vector<2x128xf32>
    %67 = vector.shape_cast %64 : vector<2x128xf32> to vector<1x2x128xf32>
    tpu.vector_store %arg4[%c0_31, %c0_32, %c0_33], %67 {strides = array<i32>} : memref<1x2x128xf32, #tpu.memory_space<vmem>>, vector<1x2x128xf32>,
    return
  }
  func.func @transform_0(%arg0: i32) -> (i32, i32, i32) {
    %c0_i32 = arith.constant 0 : i32
    %c0_i32_0 = arith.constant 0 : i32
    %c0_i32_1 = arith.constant 0 : i32
    return %arg0, %c0_i32, %c0_i32_0 : i32, i32, i32
  }
  func.func @transform_1(%arg0: i32) -> (i32, i32) {
    %c0_i32 = arith.constant 0 : i32
    %c0_i32_0 = arith.constant 0 : i32
    %c0_i32_1 = arith.constant 0 : i32
    return %c0_i32, %c0_i32_0 : i32, i32
  }
  func.func @transform_2(%arg0: i32) -> (i32, i32) {
    %c0_i32 = arith.constant 0 : i32
    %c0_i32_0 = arith.constant 0 : i32
    %c0_i32_1 = arith.constant 0 : i32
    return %c0_i32, %c0_i32_0 : i32, i32
  }
  func.func @transform_3(%arg0: i32) -> (i32, i32, i32) {
    %c0_i32 = arith.constant 0 : i32
    %c0_i32_0 = arith.constant 0 : i32
    %c0_i32_1 = arith.constant 0 : i32
    return %arg0, %c0_i32, %c0_i32_0 : i32, i32, i32
  }
}

</mosaic_0001>

<llo_original>
// kernel: tpu_custom_call.1
$region0: #{tpu_custom_call.1}
  #allocation0 [shape = 'u32[]', space=smem, size = 0x4, offset = 0x4, fixed_abs, tag = 'smem constant byte address 0x4 - core index']
  #allocation1 [shape = 'u32[144,128]{1,0:T(1,128)}', space=vmem, size = 0x12000, scoped, tag = 'internal scratch']
  %s0 = inlined_call_operand.hbm [shape: f32[1,2,128], index: 0, kind: input, shape index: {}]
  %s1 = inlined_call_operand.hbm [shape: bf16[384,256], index: 1, kind: input, shape index: {}]
  %s2 = inlined_call_operand.hbm [shape: f32[4,256], index: 2, kind: input, shape index: {}]
  %s3 = inlined_call_operand.hbm [shape: f32[1,2,128], index: 3, kind: output, shape index: {}]
  %s4 = sld [smem:[#allocation0]]
  $region34: #{tpu_custom_call.1} parent=0
    _
  %s6 = ssub.s32 1, %s4
  %s7 = scalar_select 0, %s6, %s4
  $region1: #{tpu_custom_call.1} parent=0
    #allocation2 [shape = 'u8[1024]{0}', space=vmem, size = 0x400, scoped, tag = 'input window, operand 0, single buffered']
    #allocation3 [shape = 's32[1]{0}', space=sflag, size = 0x4, scoped, tag = 'scoped memory for tpu_custom_call.1']
    #allocation4 [shape = 's32[1]{0}', space=sflag, size = 0x4, scoped, tag = 'scoped memory for tpu_custom_call.1']
    #allocation5 [shape = 'u8[196608]{0}', space=vmem, size = 0x30000, scoped, tag = 'input window, operand 1, single buffered']
    #allocation6 [shape = 's32[1]{0}', space=sflag, size = 0x4, scoped, tag = 'scoped memory for tpu_custom_call.1']
    #allocation7 [shape = 'u8[4096]{0}', space=vmem, size = 0x1000, scoped, tag = 'input window, operand 2, single buffered']
    #allocation8 [shape = 'u8[1024]{0}', space=vmem, size = 0x400, scoped, tag = 'output window, operand 0, single buffered']
    %8 = vsyncpa [#allocation3], 0
    %9 = vsyncpa [#allocation6], 0
    %10 = vsyncpa [#allocation4], 0
    // Predicated region
    $region2: #{tpu_custom_call.1} parent=1 // pred_check
      _
    $region3: #{tpu_custom_call.1} parent=1 // pred_check_branch
      %12 = sbr.rel (0) target = $region5
    $region4: #{tpu_custom_call.1} parent=1 // pred_region
      %s14 = ssub.s32 32, 32
      %15 = vsyncadd [#allocation3], %s14
      %s17 = sshll.u32 [#allocation2], 4
      %s18 = int_to_ptr.vmem [resolvable:$true] %s17
      %20 = dma.hbm_to_vmem [thread:$0]  %s0, 32, %s18, [#allocation3]
    $region5: #{tpu_custom_call.1} parent=1 // pred_fallthru
      _
    // Predicated region
    $region6: #{tpu_custom_call.1} parent=1 // pred_check
      _
    $region7: #{tpu_custom_call.1} parent=1 // pred_check_branch
      %22 = sbr.rel (0) target = $region9
    $region8: #{tpu_custom_call.1} parent=1 // pred_region
      %s24 = ssub.s32 6144, 6144
      %25 = vsyncadd [#allocation6], %s24
      %s26 = sshll.u32 [#allocation5], 4
      %s27 = int_to_ptr.vmem [resolvable:$true] %s26
      %32 = dma.hbm_to_vmem [thread:$0]  %s1, 6144, %s27, [#allocation6], 128, 128, 8
    $region9: #{tpu_custom_call.1} parent=1 // pred_fallthru
      _
    // Predicated region
    $region10: #{tpu_custom_call.1} parent=1 // pred_check
      _
    $region11: #{tpu_custom_call.1} parent=1 // pred_check_branch
      %34 = sbr.rel (0) target = $region13
    $region12: #{tpu_custom_call.1} parent=1 // pred_region
      %s36 = ssub.s32 128, 128
      %37 = vsyncadd [#allocation6], %s36
      %s39 = sshll.u32 [#allocation7], 4
      %s40 = int_to_ptr.vmem [resolvable:$true] %s39
      %42 = dma.hbm_to_vmem [thread:$0]  %s2, 128, %s40, [#allocation6]
    $region13: #{tpu_custom_call.1} parent=1 // pred_fallthru
      _
    // Predicated region
    $region14: #{tpu_custom_call.1} parent=1 // pred_check
      _
    $region15: #{tpu_custom_call.1} parent=1 // pred_check_branch
      %44 = sbr.rel (0) target = $region17
    $region16: #{tpu_custom_call.1} parent=1 // pred_region
      %45 = dma.done [#allocation3], 32
    $region17: #{tpu_custom_call.1} parent=1 // pred_fallthru
      _
    // Predicated region
    $region18: #{tpu_custom_call.1} parent=1 // pred_check
      _
    $region19: #{tpu_custom_call.1} parent=1 // pred_check_branch
      %47 = sbr.rel (0) target = $region21
    $region20: #{tpu_custom_call.1} parent=1 // pred_region
      %48 = dma.done [#allocation6], 6144
    $region21: #{tpu_custom_call.1} parent=1 // pred_fallthru
      _
    // Predicated region
    $region22: #{tpu_custom_call.1} parent=1 // pred_check
      _
    $region23: #{tpu_custom_call.1} parent=1 // pred_check_branch
      %50 = sbr.rel (0) target = $region25
    $region24: #{tpu_custom_call.1} parent=1 // pred_region
      %51 = dma.done [#allocation6], 128
    $region25: #{tpu_custom_call.1} parent=1 // pred_fallthru
      _
    %v53 = vld [vmem:[#allocation2] sm:$0x3]
    %v54 = vpack.c.bf16 %v53, %v53
    %v55 = vld [vmem:[#allocation5] sm:$0xff]
    %v56 = vld [vmem:[#allocation5 + $0x8] sm:$0xff]
    %v57 = vld [vmem:[#allocation5 + $0x10] sm:$0xff]
    %v58 = vld [vmem:[#allocation5 + $0x18] sm:$0xff]
    %v59 = vld [vmem:[#allocation5 + $0x20] sm:$0xff]
    %v60 = vld [vmem:[#allocation5 + $0x28] sm:$0xff]
    %v61 = vld [vmem:[#allocation5 + $0x30] sm:$0xff]
    %v62 = vld [vmem:[#allocation5 + $0x38] sm:$0xff]
    %v63 = vld [vmem:[#allocation5 + $0x40] sm:$0xff]
    %v64 = vld [vmem:[#allocation5 + $0x48] sm:$0xff]
    %v65 = vld [vmem:[#allocation5 + $0x50] sm:$0xff]
    %v66 = vld [vmem:[#allocation5 + $0x58] sm:$0xff]
    %v67 = vld [vmem:[#allocation5 + $0x60] sm:$0xff]
    %v68 = vld [vmem:[#allocation5 + $0x68] sm:$0xff]
    %v69 = vld [vmem:[#allocation5 + $0x70] sm:$0xff]
    %v70 = vld [vmem:[#allocation5 + $0x78] sm:$0xff]
    %v71 = vld [vmem:[#allocation7] ss:$4 sm:$0x3]
    %v73 = vlaneseq
    %v74 = vshrl.u32 %v73, 7
    %v75 = vsub.s32 0, %v74
    %v76 = vrot.slane %v71, %v75
    %v77 = vlaneseq
    %v78 = vshrl.u32 %v77, 7
    %v79 = vsub.s32 1, %v78
    %v80 = vrot.slane %v71, %v79
    %v99 = vunpack.c.l.b16 %v55
    %v100 = vunpack.c.h.b16 %v55
    %v101 = vunpack.c.l.b16 %v56
    %v102 = vunpack.c.h.b16 %v56
    %v103 = vunpack.c.l.b16 %v57
    %v104 = vunpack.c.h.b16 %v57
    %v105 = vunpack.c.l.b16 %v58
    %v106 = vunpack.c.h.b16 %v58
    %v107 = vunpack.c.l.b16 %v59
    %v108 = vunpack.c.h.b16 %v59
    %v109 = vunpack.c.l.b16 %v60
    %v110 = vunpack.c.h.b16 %v60
    %v111 = vunpack.c.l.b16 %v61
    %v112 = vunpack.c.h.b16 %v61
    %v113 = vunpack.c.l.b16 %v62
    %v114 = vunpack.c.h.b16 %v62
    %v115 = vunpack.c.l.b16 %v63
    %v116 = vunpack.c.h.b16 %v63
    %v117 = vunpack.c.l.b16 %v64
    %v118 = vunpack.c.h.b16 %v64
    %v119 = vunpack.c.l.b16 %v65
    %v120 = vunpack.c.h.b16 %v65
    %v121 = vunpack.c.l.b16 %v66
    %v122 = vunpack.c.h.b16 %v66
    %v123 = vunpack.c.l.b16 %v67
    %v124 = vunpack.c.h.b16 %v67
    %v125 = vunpack.c.l.b16 %v68
    %v126 = vunpack.c.h.b16 %v68
    %v127 = vunpack.c.l.b16 %v69
    %v128 = vunpack.c.h.b16 %v69
    %v129 = vunpack.c.l.b16 %v70
    %v130 = vunpack.c.h.b16 %v70
    %v131 = vpack.c.b16 %v101, %v99
    %v132 = vpack.c.b16 %v102, %v100
    %v133 = vpack.c.b16 %v105, %v103
    %v134 = vpack.c.b16 %v106, %v104
    %v135 = vpack.c.b16 %v109, %v107
    %v136 = vpack.c.b16 %v110, %v108
    %v137 = vpack.c.b16 %v113, %v111
    %v138 = vpack.c.b16 %v114, %v112
    %v139 = vpack.c.b16 %v117, %v115
    %v140 = vpack.c.b16 %v118, %v116
    %v141 = vpack.c.b16 %v121, %v119
    %v142 = vpack.c.b16 %v122, %v120
    %v143 = vpack.c.b16 %v125, %v123
    %v144 = vpack.c.b16 %v126, %v124
    %v145 = vpack.c.b16 %v129, %v127
    %v146 = vpack.c.b16 %v130, %v128
    %163 = vmatprep.subr.bf16.mxu0 %v132
    %164 = vmatpush1.bf16.msra.mxu0 %v131
    %165 = vmatprep.subr.bf16.mxu0 %v134
    %166 = vmatpush1.bf16.msra.mxu0 %v133
    %167 = vmatprep.subr.bf16.mxu0 %v136
    %168 = vmatpush1.bf16.msra.mxu0 %v135
    %169 = vmatprep.subr.bf16.mxu0 %v138
    %170 = vmatpush1.bf16.msra.mxu0 %v137
    %171 = vmatprep.subr.bf16.mxu0 %v140
    %172 = vmatpush1.bf16.msra.mxu0 %v139
    %173 = vmatprep.subr.bf16.mxu0 %v142
    %174 = vmatpush1.bf16.msra.mxu0 %v141
    %175 = vmatprep.subr.bf16.mxu0 %v144
    %176 = vmatpush1.bf16.msra.mxu0 %v143
    %177 = vmatprep.subr.bf16.mxu0 %v146
    %178 = vmatpush1.bf16.msra.mxu0 %v145
    %179 = vmatprep.subr.bf16.mxu0 0
    %180 = vmatpush1.bf16.msra.mxu0 0
    %181 = vmatprep.subr.bf16.mxu0 0
    %182 = vmatpush1.bf16.msra.mxu0 0
    %183 = vmatprep.subr.bf16.mxu0 0
    %184 = vmatpush1.bf16.msra.mxu0 0
    %185 = vmatprep.subr.bf16.mxu0 0
    %186 = vmatpush1.bf16.msra.mxu0 0
    %187 = vmatprep.subr.bf16.mxu0 0
    %188 = vmatpush1.bf16.msra.mxu0 0
    %189 = vmatprep.subr.bf16.mxu0 0
    %190 = vmatpush1.bf16.msra.mxu0 0
    %191 = vmatprep.subr.bf16.mxu0 0
    %192 = vmatpush1.bf16.msra.mxu0 0
    %193 = vmatprep.subr.bf16.mxu0 0
    %194 = vmatpush1.bf16.msra.mxu0 0
    %195 = vmatprep.mubr.bf16.mxu0 0
    %196 = vmatmul.mubr.bf16.gmra.mrb[0].mxu0 %v54
    %v197 = vpop.f32.mrb[0].mxu0
    %v198 = vadd.f32 %v76, %v197
    %v199 = vpop.f32.mrb[0].mxu0
    %v200 = vadd.f32 %v80, %v199
    %v201 = vpop.f32.mrb[0].mxu0
    %v202 = vpop.f32.mrb[0].mxu0
    %203 = vdwg.mxu0
    %vm204 = vcmask 1041408
    %v205 = vsel %vm204, %v198, -inf
    %v206 = vsel %vm204, %v200, -inf
    %v207 = vmax.f32 %v205, %v206
    %208 = vmax.xlane.f32.xlu0 %v207
    %v209 = vpop.xlane.xlu0 %208
    %v210 = vrot.slane %v209, 4
    %v211 = vmax.f32 %v209, %v210
    %v212 = vrot.slane %v211, 2
    %v213 = vmax.f32 %v211, %v212
    %v214 = vrot.slane %v213, 1
    %v215 = vmax.f32 %v213, %v214
    %s216 = vtos %v215
    %s217 = smul.f32 %s216, 0.65
    %v218 = vstv %s217
    %vm219 = vcmp.gt.f32.partialorder %v198, %v218
    %vm220 = vcmp.gt.f32.partialorder %v200, %v218
    %v221 = vsel %vm219, 1.0, 0.0
    %v222 = vsel %vm220, 1.0, 0.0
    %v223 = vpack.c.bf16 %v221, %v221
    %v224 = vpack.c.bf16 %v222, %v222
    %s225 = smul.f32 %s216, 0.01
    %v226 = vld [vmem:[#allocation5 + $0x80] sm:$0xf]
    %v227 = vld [vmem:[#allocation5 + $0x88] sm:$0xf]
    %v228 = vld [vmem:[#allocation5 + $0x90] sm:$0xf]
    %v229 = vld [vmem:[#allocation5 + $0x98] sm:$0xf]
    %v230 = vld [vmem:[#allocation5 + $0xa0] sm:$0xf]
    %v231 = vld [vmem:[#allocation5 + $0xa8] sm:$0xf]
    %v232 = vld [vmem:[#allocation5 + $0xb0] sm:$0xf]
    %v233 = vld [vmem:[#allocation5 + $0xb8] sm:$0xf]
    %v234 = vld [vmem:[#allocation5 + $0xc0] sm:$0xf]
    %v235 = vld [vmem:[#allocation5 + $0xc8] sm:$0xf]
    %v236 = vld [vmem:[#allocation5 + $0xd0] sm:$0xf]
    %v237 = vld [vmem:[#allocation5 + $0xd8] sm:$0xf]
    %v238 = vld [vmem:[#allocation5 + $0xe0] sm:$0xf]
    %v239 = vld [vmem:[#allocation5 + $0xe8] sm:$0xf]
    %v240 = vld [vmem:[#allocation5 + $0xf0] sm:$0xf]
    %v241 = vld [vmem:[#allocation5 + $0xf8] sm:$0xf]
    %v242 = vld [vmem:[#allocation5 + $0x100] sm:$0xf]
    %v243 = vld [vmem:[#allocation5 + $0x108] sm:$0xf]
    %v244 = vld [vmem:[#allocation5 + $0x110] sm:$0xf]
    %v245 = vld [vmem:[#allocation5 + $0x118] sm:$0xf]
    %v246 = vld [vmem:[#allocation5 + $0x120] sm:$0xf]
    %v247 = vld [vmem:[#allocation5 + $0x128] sm:$0xf]
    %v248 = vld [vmem:[#allocation5 + $0x130] sm:$0xf]
    %v249 = vld [vmem:[#allocation5 + $0x138] sm:$0xf]
    %v250 = vld [vmem:[#allocation5 + $0x140] sm:$0xf]
    %v251 = vld [vmem:[#allocation5 + $0x148] sm:$0xf]
    %v252 = vld [vmem:[#allocation5 + $0x150] sm:$0xf]
    %v253 = vld [vmem:[#allocation5 + $0x158] sm:$0xf]
    %v254 = vld [vmem:[#allocation5 + $0x160] sm:$0xf]
    %v255 = vld [vmem:[#allocation5 + $0x168] sm:$0xf]
    %v256 = vld [vmem:[#allocation5 + $0x170] sm:$0xf]
    %v257 = vld [vmem:[#allocation5 + $0x178] sm:$0xf]
    %v258 = vld [vmem:[#allocation7 + $0x1] sm:$0x1]
    %v291 = vunpack.c.l.b16 %v226
    %v292 = vunpack.c.l.b16 %v227
    %v293 = vunpack.c.l.b16 %v228
    %v294 = vunpack.c.l.b16 %v229
    %v295 = vunpack.c.l.b16 %v230
    %v296 = vunpack.c.l.b16 %v231
    %v297 = vunpack.c.l.b16 %v232
    %v298 = vunpack.c.l.b16 %v233
    %v299 = vunpack.c.l.b16 %v234
    %v300 = vunpack.c.l.b16 %v235
    %v301 = vunpack.c.l.b16 %v236
    %v302 = vunpack.c.l.b16 %v237
    %v303 = vunpack.c.l.b16 %v238
    %v304 = vunpack.c.l.b16 %v239
    %v305 = vunpack.c.l.b16 %v240
    %v306 = vunpack.c.l.b16 %v241
    %v307 = vunpack.c.l.b16 %v242
    %v308 = vunpack.c.l.b16 %v243
    %v309 = vunpack.c.l.b16 %v244
    %v310 = vunpack.c.l.b16 %v245
    %v311 = vunpack.c.l.b16 %v246
    %v312 = vunpack.c.l.b16 %v247
    %v313 = vunpack.c.l.b16 %v248
    %v314 = vunpack.c.l.b16 %v249
    %v315 = vunpack.c.l.b16 %v250
    %v316 = vunpack.c.l.b16 %v251
    %v317 = vunpack.c.l.b16 %v252
    %v318 = vunpack.c.l.b16 %v253
    %v319 = vunpack.c.l.b16 %v254
    %v320 = vunpack.c.l.b16 %v255
    %v321 = vunpack.c.l.b16 %v256
    %v322 = vunpack.c.l.b16 %v257
    %v323 = vpack.c.b16 %v292, %v291
    %v324 = vpack.c.b16 %v294, %v293
    %v325 = vpack.c.b16 %v296, %v295
    %v326 = vpack.c.b16 %v298, %v297
    %v327 = vpack.c.b16 %v300, %v299
    %v328 = vpack.c.b16 %v302, %v301
    %v329 = vpack.c.b16 %v304, %v303
    %v330 = vpack.c.b16 %v306, %v305
    %v331 = vpack.c.b16 %v308, %v307
    %v332 = vpack.c.b16 %v310, %v309
    %v333 = vpack.c.b16 %v312, %v311
    %v334 = vpack.c.b16 %v314, %v313
    %v335 = vpack.c.b16 %v316, %v315
    %v336 = vpack.c.b16 %v318, %v317
    %v337 = vpack.c.b16 %v320, %v319
    %v338 = vpack.c.b16 %v322, %v321
    %355 = vmatprep.subr.bf16.mxu0 0
    %356 = vmatpush1.bf16.msra.mxu0 %v323
    %357 = vmatprep.subr.bf16.mxu0 0
    %358 = vmatpush1.bf16.msra.mxu0 %v324
    %359 = vmatprep.subr.bf16.mxu0 0
    %360 = vmatpush1.bf16.msra.mxu0 %v325
    %361 = vmatprep.subr.bf16.mxu0 0
    %362 = vmatpush1.bf16.msra.mxu0 %v326
    %363 = vmatprep.subr.bf16.mxu0 0
    %364 = vmatpush1.bf16.msra.mxu0 %v327
    %365 = vmatprep.subr.bf16.mxu0 0
    %366 = vmatpush1.bf16.msra.mxu0 %v328
    %367 = vmatprep.subr.bf16.mxu0 0
    %368 = vmatpush1.bf16.msra.mxu0 %v329
    %369 = vmatprep.subr.bf16.mxu0 0
    %370 = vmatpush1.bf16.msra.mxu0 %v330
    %371 = vmatprep.subr.bf16.mxu0 0
    %372 = vmatpush1.bf16.msra.mxu0 %v331
    %373 = vmatprep.subr.bf16.mxu0 0
    %374 = vmatpush1.bf16.msra.mxu0 %v332
    %375 = vmatprep.subr.bf16.mxu0 0
    %376 = vmatpush1.bf16.msra.mxu0 %v333
    %377 = vmatprep.subr.bf16.mxu0 0
    %378 = vmatpush1.bf16.msra.mxu0 %v334
    %379 = vmatprep.subr.bf16.mxu0 0
    %380 = vmatpush1.bf16.msra.mxu0 %v335
    %381 = vmatprep.subr.bf16.mxu0 0
    %382 = vmatpush1.bf16.msra.mxu0 %v336
    %383 = vmatprep.subr.bf16.mxu0 0
    %384 = vmatpush1.bf16.msra.mxu0 %v337
    %385 = vmatprep.subr.bf16.mxu0 0
    %386 = vmatpush1.bf16.msra.mxu0 %v338
    %387 = vmatprep.mubr.bf16.mxu0 %v224
    %388 = vmatmul.mubr.bf16.gmra.mrb[0].mxu0 %v223
    %v389 = vpop.f32.mrb[0].mxu0
    %v390 = vadd.f32 0.0, %v389
    %v391 = vpop.f32.mrb[0].mxu0
    %v392 = vpop.f32.mrb[0].mxu0
    %v393 = vpop.f32.mrb[0].mxu0
    %394 = vdwg.mxu0
    %v395 = vstv %s225
    %v396 = vmul.f32 %v395, %v390
    %v397 = vlaneseq
    %v398 = vshrl.u32 %v397, 7
    %v399 = vsub.s32 0, %v398
    %v400 = vrot.slane %v258, %v399
    %v401 = vadd.f32 %v396, %v400
    %v402 = vsel %vm204, %v401, -inf
    %403 = vmax.xlane.f32.xlu0 %v402
    %v404 = vpop.xlane.xlu0 %403
    %v405 = vrot.slane %v404, 4
    %v406 = vmax.f32 %v404, %v405
    %v407 = vrot.slane %v406, 2
    %v408 = vmax.f32 %v406, %v407
    %v409 = vrot.slane %v408, 1
    %v410 = vmax.f32 %v408, %v409
    %s411 = vtos %v410
    %s412 = smul.f32 %s411, 0.65
    %v413 = vstv %s412
    %vm414 = vcmp.gt.f32.partialorder %v401, %v413
    %v415 = vsel %vm414, 1.0, 0.0
    %v416 = vpack.c.bf16 %v415, %v415
    %s417 = smul.f32 %s411, 0.01
    %v418 = vld [vmem:[#allocation5 + $0xc4] sm:$0xf]
    %v419 = vld [vmem:[#allocation5 + $0xcc] sm:$0xf]
    %v420 = vld [vmem:[#allocation5 + $0xd4] sm:$0xf]
    %v421 = vld [vmem:[#allocation5 + $0xdc] sm:$0xf]
    %v422 = vld [vmem:[#allocation5 + $0xe4] sm:$0xf]
    %v423 = vld [vmem:[#allocation5 + $0xec] sm:$0xf]
    %v424 = vld [vmem:[#allocation5 + $0xf4] sm:$0xf]
    %v425 = vld [vmem:[#allocation5 + $0xfc] sm:$0xf]
    %v426 = vld [vmem:[#allocation5 + $0x104] sm:$0xf]
    %v427 = vld [vmem:[#allocation5 + $0x10c] sm:$0xf]
    %v428 = vld [vmem:[#allocation5 + $0x114] sm:$0xf]
    %v429 = vld [vmem:[#allocation5 + $0x11c] sm:$0xf]
    %v430 = vld [vmem:[#allocation5 + $0x124] sm:$0xf]
    %v431 = vld [vmem:[#allocation5 + $0x12c] sm:$0xf]
    %v432 = vld [vmem:[#allocation5 + $0x134] sm:$0xf]
    %v433 = vld [vmem:[#allocation5 + $0x13c] sm:$0xf]
    %v434 = vld [vmem:[#allocation7 + $0x2] sm:$0x1]
    %v451 = vunpack.c.l.b16 %v418
    %v452 = vunpack.c.l.b16 %v419
    %v453 = vunpack.c.l.b16 %v420
    %v454 = vunpack.c.l.b16 %v421
    %v455 = vunpack.c.l.b16 %v422
    %v456 = vunpack.c.l.b16 %v423
    %v457 = vunpack.c.l.b16 %v424
    %v458 = vunpack.c.l.b16 %v425
    %v459 = vunpack.c.l.b16 %v426
    %v460 = vunpack.c.l.b16 %v427
    %v461 = vunpack.c.l.b16 %v428
    %v462 = vunpack.c.l.b16 %v429
    %v463 = vunpack.c.l.b16 %v430
    %v464 = vunpack.c.l.b16 %v431
    %v465 = vunpack.c.l.b16 %v432
    %v466 = vunpack.c.l.b16 %v433
    %v467 = vpack.c.b16 %v452, %v451
    %v468 = vpack.c.b16 %v454, %v453
    %v469 = vpack.c.b16 %v456, %v455
    %v470 = vpack.c.b16 %v458, %v457
    %v471 = vpack.c.b16 %v460, %v459
    %v472 = vpack.c.b16 %v462, %v461
    %v473 = vpack.c.b16 %v464, %v463
    %v474 = vpack.c.b16 %v466, %v465
    %483 = vmatprep.subr.bf16.mxu0 0
    %484 = vmatpush1.bf16.msra.mxu0 %v467
    %485 = vmatprep.subr.bf16.mxu0 0
    %486 = vmatpush1.bf16.msra.mxu0 %v468
    %487 = vmatprep.subr.bf16.mxu0 0
    %488 = vmatpush1.bf16.msra.mxu0 %v469
    %489 = vmatprep.subr.bf16.mxu0 0
    %490 = vmatpush1.bf16.msra.mxu0 %v470
    %491 = vmatprep.subr.bf16.mxu0 0
    %492 = vmatpush1.bf16.msra.mxu0 %v471
    %493 = vmatprep.subr.bf16.mxu0 0
    %494 = vmatpush1.bf16.msra.mxu0 %v472
    %495 = vmatprep.subr.bf16.mxu0 0
    %496 = vmatpush1.bf16.msra.mxu0 %v473
    %497 = vmatprep.subr.bf16.mxu0 0
    %498 = vmatpush1.bf16.msra.mxu0 %v474
    %499 = vmatprep.subr.bf16.mxu0 0
    %500 = vmatpush1.bf16.msra.mxu0 0
    %501 = vmatprep.subr.bf16.mxu0 0
    %502 = vmatpush1.bf16.msra.mxu0 0
    %503 = vmatprep.subr.bf16.mxu0 0
    %504 = vmatpush1.bf16.msra.mxu0 0
    %505 = vmatprep.subr.bf16.mxu0 0
    %506 = vmatpush1.bf16.msra.mxu0 0
    %507 = vmatprep.subr.bf16.mxu0 0
    %508 = vmatpush1.bf16.msra.mxu0 0
    %509 = vmatprep.subr.bf16.mxu0 0
    %510 = vmatpush1.bf16.msra.mxu0 0
    %511 = vmatprep.subr.bf16.mxu0 0
    %512 = vmatpush1.bf16.msra.mxu0 0
    %513 = vmatprep.subr.bf16.mxu0 0
    %514 = vmatpush1.bf16.msra.mxu0 0
    %515 = vmatprep.mubr.bf16.mxu0 0
    %516 = vmatmul.mubr.bf16.gmra.mrb[0].mxu0 %v416
    %v517 = vpop.f32.mrb[0].mxu0
    %v518 = vadd.f32 0.0, %v517
    %v519 = vpop.f32.mrb[0].mxu0
    %v520 = vpop.f32.mrb[0].mxu0
    %v521 = vpop.f32.mrb[0].mxu0
    %522 = vdwg.mxu0
    %v523 = vstv %s417
    %v524 = vmul.f32 %v523, %v518
    %v525 = vlaneseq
    %v526 = vshrl.u32 %v525, 7
    %v527 = vsub.s32 0, %v526
    %v528 = vrot.slane %v434, %v527
    %v529 = vadd.f32 %v524, %v528
    %vm530 = vcmask 517120
    %v531 = vsel %vm530, %v529, -inf
    %532 = vmax.xlane.f32.xlu0 %v531
    %v533 = vpop.xlane.xlu0 %532
    %v534 = vrot.slane %v533, 4
    %v535 = vmax.f32 %v533, %v534
    %v536 = vrot.slane %v535, 2
    %v537 = vmax.f32 %v535, %v536
    %v538 = vrot.slane %v537, 1
    %v539 = vmax.f32 %v537, %v538
    %s540 = vtos %v539
    %s541 = smul.f32 %s540, 0.65
    %v542 = vstv %s541
    %vm543 = vcmp.gt.f32.partialorder %v529, %v542
    %v544 = vsel %vm543, 1.0, 0.0
    %v545 = vpack.c.bf16 %v544, %v544
    %s546 = smul.f32 %s540, 0.01
    %v547 = vld [vmem:[#allocation5 + $0x84] sm:$0xf]
    %v548 = vld [vmem:[#allocation5 + $0x8c] sm:$0xf]
    %v549 = vld [vmem:[#allocation5 + $0x94] sm:$0xf]
    %v550 = vld [vmem:[#allocation5 + $0x9c] sm:$0xf]
    %v551 = vld [vmem:[#allocation5 + $0xa4] sm:$0xf]
    %v552 = vld [vmem:[#allocation5 + $0xac] sm:$0xf]
    %v553 = vld [vmem:[#allocation5 + $0xb4] sm:$0xf]
    %v554 = vld [vmem:[#allocation5 + $0xbc] sm:$0xf]
    %v555 = vld [vmem:[#allocation7 + $0x3] sm:$0x1]
    %v564 = vunpack.c.l.b16 %v547
    %v565 = vunpack.c.l.b16 %v548
    %v566 = vunpack.c.l.b16 %v549
    %v567 = vunpack.c.l.b16 %v550
    %v568 = vunpack.c.l.b16 %v551
    %v569 = vunpack.c.l.b16 %v552
    %v570 = vunpack.c.l.b16 %v553
    %v571 = vunpack.c.l.b16 %v554
    %v572 = vpack.c.b16 %v565, %v564
    %v573 = vpack.c.b16 %v567, %v566
    %v574 = vpack.c.b16 %v569, %v568
    %v575 = vpack.c.b16 %v571, %v570
    %vm580 = vcmask 523264
    %v582 = vsel %vm580, %v545, 0
    %584 = vmatprep.subr.bf16.mxu0 0
    %585 = vmatpush1.bf16.msra.mxu0 %v572
    %586 = vmatprep.subr.bf16.mxu0 0
    %587 = vmatpush1.bf16.msra.mxu0 %v573
    %588 = vmatprep.subr.bf16.mxu0 0
    %589 = vmatpush1.bf16.msra.mxu0 %v574
    %590 = vmatprep.subr.bf16.mxu0 0
    %591 = vmatpush1.bf16.msra.mxu0 %v575
    %592 = vmatprep.subr.bf16.mxu0 0
    %593 = vmatpush1.bf16.msra.mxu0 0
    %594 = vmatprep.subr.bf16.mxu0 0
    %595 = vmatpush1.bf16.msra.mxu0 0
    %596 = vmatprep.subr.bf16.mxu0 0
    %597 = vmatpush1.bf16.msra.mxu0 0
    %598 = vmatprep.subr.bf16.mxu0 0
    %599 = vmatpush1.bf16.msra.mxu0 0
    %600 = vmatprep.subr.bf16.mxu0 0
    %601 = vmatpush1.bf16.msra.mxu0 0
    %602 = vmatprep.subr.bf16.mxu0 0
    %603 = vmatpush1.bf16.msra.mxu0 0
    %604 = vmatprep.subr.bf16.mxu0 0
    %605 = vmatpush1.bf16.msra.mxu0 0
    %606 = vmatprep.subr.bf16.mxu0 0
    %607 = vmatpush1.bf16.msra.mxu0 0
    %608 = vmatprep.subr.bf16.mxu0 0
    %609 = vmatpush1.bf16.msra.mxu0 0
    %610 = vmatprep.subr.bf16.mxu0 0
    %611 = vmatpush1.bf16.msra.mxu0 0
    %612 = vmatprep.subr.bf16.mxu0 0
    %613 = vmatpush1.bf16.msra.mxu0 0
    %614 = vmatprep.subr.bf16.mxu0 0
    %615 = vmatpush1.bf16.msra.mxu0 0
    %616 = vmatprep.mubr.bf16.mxu0 0
    %617 = vmatmul.mubr.bf16.gmra.mrb[0].mxu0 %v582
    %v618 = vpop.f32.mrb[0].mxu0
    %v619 = vadd.f32 0.0, %v618
    %v620 = vpop.f32.mrb[0].mxu0
    %v621 = vpop.f32.mrb[0].mxu0
    %v622 = vpop.f32.mrb[0].mxu0
    %623 = vdwg.mxu0
    %v624 = vstv %s546
    %v625 = vmul.f32 %v624, %v619
    %v626 = vlaneseq
    %v627 = vshrl.u32 %v626, 7
    %v628 = vsub.s32 0, %v627
    %v629 = vrot.slane %v555, %v628
    %v630 = vadd.f32 %v625, %v629
    %631 = vst [vmem:[#allocation8] sm:$0x3] %v630
    // Predicated region
    $region26: #{tpu_custom_call.1} parent=1 // pred_check
      _
    $region27: #{tpu_custom_call.1} parent=1 // pred_check_branch
      %633 = sbr.rel (0) target = $region29
    $region28: #{tpu_custom_call.1} parent=1 // pred_region
      %s635 = ssub.s32 32, 32
      %636 = vsyncadd [#allocation4], %s635
      %s638 = sshll.u32 [#allocation8], 4
      %s639 = int_to_ptr.vmem [resolvable:$true] %s638
      %641 = dma.vmem_to_hbm [thread:$0]  %s639, 32, %s3, [#allocation4]
    $region29: #{tpu_custom_call.1} parent=1 // pred_fallthru
      _
    // Predicated region
    $region30: #{tpu_custom_call.1} parent=1 // pred_check
      _
    $region31: #{tpu_custom_call.1} parent=1 // pred_check_branch
      %643 = sbr.rel (0) target = $region33
    $region32: #{tpu_custom_call.1} parent=1 // pred_region
      %644 = dma.done [#allocation4], 32
    $region33: #{tpu_custom_call.1} parent=1 // pred_fallthru
      _
    %645 = vsyncpa [#allocation3], 1
    %646 = vsyncpa [#allocation6], 1
    %647 = vsyncpa [#allocation4], 1

</llo_original>
